<compile_context>
chip_gen: v7x
topology: tpu7x:2x2x1
jax: 0.10.0
libtpu: 0.0.40
codegen_flags: <defaults>
</compile_context>

<pallas_src>
import functools
import math

import jax
import jax.numpy as jnp
from jax import lax
from jax.experimental import pallas as pl
from jax.experimental.pallas import tpu as pltpu


_INV_SQRT2 = 0.7071067811865476


def _gelu_exact(x):
    # nn.GELU() default = exact erf formulation (kept in float32 on the VPU).
    return 0.5 * x * (1.0 + lax.erf(x * _INV_SQRT2))


def _round_up(v, m):
    return (v + m - 1) // m * m


def _cdiv(a, b):
    return (a + b - 1) // b


def _single_buffer():
    # Resident blocks (constant index_map) don't need double-buffering.
    try:
        return pl.Buffered(1)
    except Exception:  # older jax without pipeline_mode support
        return None


def _vmem_caps(budget_override):
    """(tile budget, Mosaic vmem_limit) scaled to this chip's physical VMEM."""
    cap = 64 * 1024 * 1024  # conservative fallback (v7x-sized)
    try:
        cap = int(getattr(pltpu.get_tpu_info(), "vmem_capacity_bytes", cap))
    except Exception:
        pass
    limit = int(cap * 0.90)
    budget = int(cap * 0.70) if budget_override is None else int(budget_override)
    budget = min(budget, limit - (4 << 20))
    return budget, limit


def _mlp_kernel_accout(x_ref, w1_ref, b1_ref, w2_ref, b2_ref, o_ref):
    """float32 output: accumulate hidden-chunk partials directly in o_ref."""
    k = pl.program_id(1)
    h = jnp.dot(x_ref[...], w1_ref[...], preferred_element_type=jnp.float32)
    h = _gelu_exact(h + b1_ref[...])                       # f32 bias + GELU
    part = jnp.dot(h.astype(jnp.bfloat16), w2_ref[...],
                   preferred_element_type=jnp.float32)

    @pl.when(k == 0)
    def _():
        o_ref[...] = part + b2_ref[...]

    @pl.when(k > 0)
    def _():
        o_ref[...] += part


def _mlp_kernel_scratch(x_ref, w1_ref, b1_ref, w2_ref, b2_ref, o_ref, acc_ref):
    """Non-f32 output: f32 accumulator scratch, cast once on the last chunk."""
    k = pl.program_id(1)

    @pl.when(k == 0)
    def _():
        acc_ref[...] = jnp.zeros_like(acc_ref)

    h = jnp.dot(x_ref[...], w1_ref[...], preferred_element_type=jnp.float32)
    h = _gelu_exact(h + b1_ref[...])
    acc_ref[...] += jnp.dot(h.astype(jnp.bfloat16), w2_ref[...],
                            preferred_element_type=jnp.float32)

    @pl.when(k == pl.num_programs(1) - 1)
    def _():
        o_ref[...] = (acc_ref[...] + b2_ref[...]).astype(o_ref.dtype)


@functools.partial(jax.jit, static_argnames=("tm", "vmem_budget_bytes"))
def trans_mlp(x, w1, b1, w2, b2, *, tm=512, vmem_budget_bytes=None):
    """Fused MLP: gelu(x @ w1 + b1) @ w2 + b2 over the last axis of x.

    Weights are stored as (in, hidden) / (hidden, out), i.e. pre-transposed
    relative to torch.nn.Linear's (out, in) layout.
    """
    in_f = x.shape[-1]
    hid = w1.shape[1]
    out_f = w2.shape[1]
    lead = x.shape[:-1]
    m = math.prod(lead) if lead else 1

    out_dtype = x.dtype
    out_itemsize = jnp.dtype(out_dtype).itemsize
    use_scratch = out_dtype != jnp.float32

    # Lane-dense padding (last dims -> multiples of 128).
    in_f_p = _round_up(in_f, 128)
    out_f_p = _round_up(out_f, 128)
    hid_128 = _round_up(hid, 128)

    budget, vmem_limit = _vmem_caps(vmem_budget_bytes)

    # M tiles are MXU-aligned (128) when M allows, otherwise sublane-aligned.
    m_align = 128 if m >= 128 else 16

    def balance_m(tm_max):
        # Minimal-padding M tiling: tm = round_up(cdiv(m, n_m), align) with at
        # least 2 tiles when possible so both v7x TensorCores get work.
        m_r = _round_up(m, m_align)
        n = _cdiv(m_r, max(m_align, min(tm_max, m_r)))
        if m_r >= 2 * m_align:
            n = max(n, 2)
        tm_ = _round_up(_cdiv(m_r, n), m_align)
        n = _cdiv(m, tm_)
        return tm_, n, n * tm_

    def footprint(tm_, tkh_, n_k_):
        wbuf = 1 if n_k_ == 1 else 2            # resident weights: 1 buffer
        f = (2 * tm_ * in_f_p * 2               # x tile (bf16, double-buffered)
             + wbuf * in_f_p * tkh_ * 2         # w1 chunk (bf16)
             + wbuf * tkh_ * 4                  # b1 chunk (f32)
             + wbuf * tkh_ * out_f_p * 2        # w2 chunk (bf16)
             + out_f_p * 4                      # b2 (resident)
             + 2 * tm_ * out_f_p * out_itemsize # output tile (double-buffered)
             + tm_ * tkh_ * 6)                  # live f32 hidden + bf16 copy
        if use_scratch:
            f += tm_ * out_f_p * 4              # f32 accumulator scratch
        return f

    tm_target = max(m_align, (tm // m_align) * m_align)
    tm_sel, _, _ = balance_m(tm_target)

    # Prefer fully-resident weights (n_k == 1); otherwise chunk the hidden dim
    # with minimal padding; shrink the M tile only as a last resort.
    tkh_sel = n_k_sel = None
    while True:
        for n_k_try in range(1, hid_128 // 128 + 1):
            tkh_try = _round_up(_cdiv(hid_128, n_k_try), 128)
            if footprint(tm_sel, tkh_try, n_k_try) <= budget:
                tkh_sel, n_k_sel = tkh_try, n_k_try
                break
        if tkh_sel is not None or tm_sel <= m_align:
            break
        tm_sel = max(m_align, (tm_sel // 2 // m_align) * m_align)
    if tkh_sel is None:  # nothing fits the budget; take the smallest config
        tkh_sel, n_k_sel = 128, _cdiv(hid_128, 128)

    # Streamed weights: intensity == tm flops per weight byte, so grow the M
    # tile toward 1024 rows while it still fits the budget (v6e roofline).
    if n_k_sel > 1:
        m_cap = _round_up(m, m_align)
        while tm_sel < min(1024, m_cap):
            tm_try = _round_up(min(2 * tm_sel, 1024, m_cap), m_align)
            if tm_try == tm_sel or footprint(tm_try, tkh_sel, n_k_sel) > budget:
                break
            tm_sel = tm_try

    # Final, balanced M tiling for the selected tile size.
    tm_sel, n_m, m_p = balance_m(tm_sel)
    tkh, n_k = tkh_sel, n_k_sel
    hid_p = n_k * tkh

    # Zero-pad everything; padded rows/cols contribute exactly zero to the
    # valid output region and are sliced away at the end.  x is cast to bf16
    # here (halves DMA + VMEM for the x tile; no per-k in-kernel cast).
    x2 = jnp.pad(x.reshape(m, in_f),
                 ((0, m_p - m), (0, in_f_p - in_f))).astype(jnp.bfloat16)
    w1_p = jnp.pad(w1, ((0, in_f_p - in_f), (0, hid_p - hid))).astype(jnp.bfloat16)
    b1_p = jnp.pad(b1, (0, hid_p - hid)).astype(jnp.float32).reshape(1, hid_p)
    w2_p = jnp.pad(w2, ((0, hid_p - hid), (0, out_f_p - out_f))).astype(jnp.bfloat16)
    b2_p = jnp.pad(b2, (0, out_f_p - out_f)).astype(jnp.float32).reshape(1, out_f_p)

    cost = pl.CostEstimate(
        flops=2 * m_p * hid_p * (in_f_p + out_f_p),
        transcendentals=m_p * hid_p,
        bytes_accessed=int(x2.size * 2 + w1_p.size * 2 + w2_p.size * 2
                           + b1_p.size * 4 + b2_p.size * 4
                           + m_p * out_f_p * out_itemsize),
    )

    resident = _single_buffer()
    w_mode = resident if n_k == 1 else None  # weights resident iff one chunk

    kernel = _mlp_kernel_scratch if use_scratch else _mlp_kernel_accout
    scratch = ([pltpu.VMEM((tm_sel, out_f_p), jnp.float32)]
               if use_scratch else [])

    out_p = pl.pallas_call(
        kernel,
        out_shape=jax.ShapeDtypeStruct((m_p, out_f_p), out_dtype),
        grid_spec=pltpu.PrefetchScalarGridSpec(
            num_scalar_prefetch=0,
            grid=(n_m, n_k),
            in_specs=[
                pl.BlockSpec((tm_sel, in_f_p), lambda i, k: (i, 0)),
                pl.BlockSpec((in_f_p, tkh), lambda i, k: (0, k),
                             pipeline_mode=w_mode),
                pl.BlockSpec((1, tkh), lambda i, k: (0, k),
                             pipeline_mode=w_mode),
                pl.BlockSpec((tkh, out_f_p), lambda i, k: (k, 0),
                             pipeline_mode=w_mode),
                pl.BlockSpec((1, out_f_p), lambda i, k: (0, 0),
                             pipeline_mode=resident),
            ],
            out_specs=pl.BlockSpec((tm_sel, out_f_p), lambda i, k: (i, 0)),
            scratch_shapes=scratch,
        ),
        compiler_params=pltpu.CompilerParams(
            dimension_semantics=("parallel", "arbitrary"),
            vmem_limit_bytes=vmem_limit,
        ),
        cost_estimate=cost,
    )(x2, w1_p, b1_p, w2_p, b2_p)

    return out_p[:m, :out_f].reshape(*lead, out_f)


def init_params(key, in_feature, out_feature, expand_dim_ratio=4,
                dtype=jnp.float32):
    """Deterministic params matching nn.Linear shapes (pre-transposed to (in, out))."""
    hid = int(in_feature * expand_dim_ratio)
    k1, k2, k3, k4 = jax.random.split(key, 4)
    # PyTorch Linear default init: U(-1/sqrt(fan_in), 1/sqrt(fan_in))
    lim1 = 1.0 / float(jnp.sqrt(in_feature))
    lim2 = 1.0 / float(jnp.sqrt(hid))
    w1 = jax.random.uniform(k1, (in_feature, hid), dtype, -lim1, lim1)
    b1 = jax.random.uniform(k2, (hid,), dtype, -lim1, lim1)
    w2 = jax.random.uniform(k3, (hid, out_feature), dtype, -lim2, lim2)
    b2 = jax.random.uniform(k4, (out_feature,), dtype, -lim2, lim2)
    return w1, b1, w2, b2


if __name__ == "__main__":
    key = jax.random.PRNGKey(0)

    def reference(x, w1, b1, w2, b2):
        # Pure-JAX float32 reference (exact-erf GELU, same as nn.GELU()).
        h = x @ w1 + b1
        h = 0.5 * h * (1.0 + lax.erf(h / jnp.sqrt(2.0)))
        return h @ w2 + b2

    # Case 1: tiny shape matching the module defaults (hidden = 4 * in).
    kx, kp = jax.random.split(key)
    batch, seq, in_feature, out_feature = 2, 8, 32, 32  # hidden = 128
    x = jax.random.normal(kx, (batch, seq, in_feature), dtype=jnp.float32)
    w1, b1, w2, b2 = init_params(kp, in_feature, out_feature)
    out = jax.block_until_ready(trans_mlp(x, w1, b1, w2, b2))
    ref = reference(x, w1, b1, w2, b2)
    assert out.shape == (batch, seq, out_feature)
    # bf16 MXU matmuls with f32 accumulation -> loose tolerance vs fp32 ref.
    assert jnp.allclose(out, ref, atol=3e-2, rtol=3e-2), float(
        jnp.max(jnp.abs(out - ref)))

    # Case 2: exercises multi-M-tile path + non-multiple-of-128 features.
    kx2, kp2 = jax.random.split(kp)
    x2 = jax.random.normal(kx2, (2, 200, 96), dtype=jnp.float32)  # hidden = 384
    p2 = init_params(kp2, 96, 64)
    out2 = jax.block_until_ready(trans_mlp(x2, *p2))
    ref2 = reference(x2, *p2)
    assert out2.shape == (2, 200, 64)
    assert jnp.allclose(out2, ref2, atol=3e-2, rtol=3e-2), float(
        jnp.max(jnp.abs(out2 - ref2)))

    print("KERNEL_OK")
</pallas_src>

<mosaic_0001>
module attributes {stable_mosaic.version = 11 : i64} {
  func.func @_mlp_kernel_accout(%arg0: i32, %arg1: i32, %arg2: memref<16x128xbf16, #tpu.memory_space<vmem>>, %arg3: memref<128x128xbf16, #tpu.memory_space<vmem>>, %arg4: memref<1x128xf32, #tpu.memory_space<vmem>>, %arg5: memref<128x128xbf16, #tpu.memory_space<vmem>>, %arg6: memref<1x128xf32, #tpu.memory_space<vmem>>, %arg7: memref<16x128xf32, #tpu.memory_space<vmem>>) attributes {dimension_semantics = [#tpu.dimension_semantics<parallel>, #tpu.dimension_semantics<arbitrary>], iteration_bounds = array<i64: 1, 1>, scalar_prefetch = 0 : i64, scratch_operands = 0 : i64, tpu.core_type = #tpu.core_type<tc>, window_params = [{transform_indices = @transform_0, window_bounds = array<i64: 16, 128>}, {pipeline_mode = #tpu.pipeline_mode<synchronous>, transform_indices = @transform_1, window_bounds = array<i64: 128, 128>}, {pipeline_mode = #tpu.pipeline_mode<synchronous>, transform_indices = @transform_2, window_bounds = array<i64: 1, 128>}, {pipeline_mode = #tpu.pipeline_mode<synchronous>, transform_indices = @transform_3, window_bounds = array<i64: 128, 128>}, {pipeline_mode = #tpu.pipeline_mode<synchronous>, transform_indices = @transform_4, window_bounds = array<i64: 1, 128>}, {transform_indices = @transform_5, window_bounds = array<i64: 16, 128>}]} {
    %c0 = arith.constant 0 : index
    %c0_0 = arith.constant 0 : index
    %0 = vector.load %arg2[%c0, %c0_0] : memref<16x128xbf16, #tpu.memory_space<vmem>>, vector<16x128xbf16>
    %c0_1 = arith.constant 0 : index
    %c0_2 = arith.constant 0 : index
    %1 = vector.load %arg3[%c0_1, %c0_2] : memref<128x128xbf16, #tpu.memory_space<vmem>>, vector<128x128xbf16>
    %cst = arith.constant dense<0.000000e+00> : vector<16x128xf32>
    %2 = tpu.matmul %0, %1, %cst {dimension_numbers = #tpu.dot_dimension_numbers<[1], [0], [0], [1], [0, 0, 1, 1], [], []>} : vector<16x128xbf16>, vector<128x128xbf16>, vector<16x128xf32> -> vector<16x128xf32>
    %c0_3 = arith.constant 0 : index
    %c0_4 = arith.constant 0 : index
    %3 = vector.load %arg4[%c0_3, %c0_4] : memref<1x128xf32, #tpu.memory_space<vmem>>, vector<1x128xf32>
    %4 = vector.broadcast %3 : vector<1x128xf32> to vector<16x128xf32>
    %5 = arith.addf %2, %4 : vector<16x128xf32>
    %cst_5 = arith.constant 5.000000e-01 : f32
    %6 = vector.broadcast %cst_5 : f32 to vector<16x128xf32>
    %7 = arith.mulf %6, %5 : vector<16x128xf32>
    %cst_6 = arith.constant 0.707106769 : f32
    %8 = vector.broadcast %cst_6 : f32 to vector<16x128xf32>
    %9 = arith.mulf %5, %8 : vector<16x128xf32>
    %10 = math.erf %9 : vector<16x128xf32>
    %cst_7 = arith.constant 1.000000e+00 : f32
    %11 = vector.broadcast %cst_7 : f32 to vector<16x128xf32>
    %12 = arith.addf %11, %10 : vector<16x128xf32>
    %13 = arith.mulf %7, %12 : vector<16x128xf32>
    %14 = arith.truncf %13 : vector<16x128xf32> to vector<16x128xbf16>
    %c0_8 = arith.constant 0 : index
    %c0_9 = arith.constant 0 : index
    %15 = vector.load %arg5[%c0_8, %c0_9] : memref<128x128xbf16, #tpu.memory_space<vmem>>, vector<128x128xbf16>
    %cst_10 = arith.constant dense<0.000000e+00> : vector<16x128xf32>
    %16 = tpu.matmul %14, %15, %cst_10 {dimension_numbers = #tpu.dot_dimension_numbers<[1], [0], [0], [1], [0, 0, 1, 1], [], []>} : vector<16x128xbf16>, vector<128x128xbf16>, vector<16x128xf32> -> vector<16x128xf32>
    %c0_i32 = arith.constant 0 : i32
    %17 = arith.cmpi eq, %arg1, %c0_i32 : i32
    %18 = arith.extui %17 : i1 to i32
    %c0_i32_11 = arith.constant 0 : i32
    %19 = arith.cmpi ne, %18, %c0_i32_11 : i32
    scf.if %19 {
      %c0_14 = arith.constant 0 : index
      %c0_15 = arith.constant 0 : index
      %23 = vector.load %arg6[%c0_14, %c0_15] : memref<1x128xf32, #tpu.memory_space<vmem>>, vector<1x128xf32>
      %24 = vector.broadcast %23 : vector<1x128xf32> to vector<16x128xf32>
      %25 = arith.addf %16, %24 : vector<16x128xf32>
      %c0_16 = arith.constant 0 : index
      %c0_17 = arith.constant 0 : index
      %26 = vector.load %arg7[%c0_16, %c0_17] : memref<16x128xf32, #tpu.memory_space<vmem>>, vector<16x128xf32>
      tpu.vector_store %arg7[%c0_16, %c0_17], %25 {strides = array<i32>} : memref<16x128xf32, #tpu.memory_space<vmem>>, vector<16x128xf32>,
    } else {
    }
    %c0_i32_12 = arith.constant 0 : i32
    %20 = arith.cmpi sgt, %arg1, %c0_i32_12 : i32
    %21 = arith.extui %20 : i1 to i32
    %c0_i32_13 = arith.constant 0 : i32
    %22 = arith.cmpi ne, %21, %c0_i32_13 : i32
    scf.if %22 {
      %c0_14 = arith.constant 0 : index
      %c0_15 = arith.constant 0 : index
      %23 = vector.load %arg7[%c0_14, %c0_15] : memref<16x128xf32, #tpu.memory_space<vmem>>, vector<16x128xf32>
      %24 = arith.addf %23, %16 : vector<16x128xf32>
      %c0_16 = arith.constant 0 : index
      %c0_17 = arith.constant 0 : index
      %25 = vector.load %arg7[%c0_16, %c0_17] : memref<16x128xf32, #tpu.memory_space<vmem>>, vector<16x128xf32>
      tpu.vector_store %arg7[%c0_16, %c0_17], %24 {strides = array<i32>} : memref<16x128xf32, #tpu.memory_space<vmem>>, vector<16x128xf32>,
    } else {
    }
    return
  }
  func.func @transform_0(%arg0: i32, %arg1: i32) -> (i32, i32) {
    %c0_i32 = arith.constant 0 : i32
    %c0_i32_0 = arith.constant 0 : i32
    return %arg0, %c0_i32 : i32, i32
  }
  func.func @transform_1(%arg0: i32, %arg1: i32) -> (i32, i32) {
    %c0_i32 = arith.constant 0 : i32
    %c0_i32_0 = arith.constant 0 : i32
    return %c0_i32, %arg1 : i32, i32
  }
  func.func @transform_2(%arg0: i32, %arg1: i32) -> (i32, i32) {
    %c0_i32 = arith.constant 0 : i32
    %c0_i32_0 = arith.constant 0 : i32
    return %c0_i32, %arg1 : i32, i32
  }
  func.func @transform_3(%arg0: i32, %arg1: i32) -> (i32, i32) {
    %c0_i32 = arith.constant 0 : i32
    %c0_i32_0 = arith.constant 0 : i32
    return %arg1, %c0_i32 : i32, i32
  }
  func.func @transform_4(%arg0: i32, %arg1: i32) -> (i32, i32) {
    %c0_i32 = arith.constant 0 : i32
    %c0_i32_0 = arith.constant 0 : i32
    %c0_i32_1 = arith.constant 0 : i32
    return %c0_i32, %c0_i32_0 : i32, i32
  }
  func.func @transform_5(%arg0: i32, %arg1: i32) -> (i32, i32) {
    %c0_i32 = arith.constant 0 : i32
    %c0_i32_0 = arith.constant 0 : i32
    return %arg0, %c0_i32 : i32, i32
  }
}

</mosaic_0001>

<llo_original>
// kernel: trans_mlp.1
$region0: #{trans_mlp.1}
  #allocation0 [shape = 'u32[]', space=smem, size = 0x4, offset = 0x4, fixed_abs, tag = 'smem constant byte address 0x4 - core index']
  #allocation1 [shape = 'u32[144,128]{1,0:T(1,128)}', space=vmem, size = 0x12000, scoped, tag = 'internal scratch']
  %s0 = inlined_call_operand.vmem [shape: bf16[16,128], index: 0, kind: input, shape index: {}]
  %s1 = inlined_call_operand.vmem [shape: bf16[128,128], index: 1, kind: input, shape index: {}]
  %s2 = inlined_call_operand.vmem [shape: f32[1,128], index: 2, kind: input, shape index: {}]
  %s3 = inlined_call_operand.vmem [shape: bf16[128,128], index: 3, kind: input, shape index: {}]
  %s4 = inlined_call_operand.vmem [shape: f32[1,128], index: 4, kind: input, shape index: {}]
  %s5 = inlined_call_operand.vmem [shape: f32[16,128], index: 5, kind: output, shape index: {}]
  %s6 = sld [smem:[#allocation0]]
  $region38: #{trans_mlp.1} parent=0
    _
  %s8 = ssub.s32 1, %s6
  %s9 = scalar_select 0, %s8, %s6
  // Predicated region
  $region2: #{trans_mlp.1} parent=0 // pred_check
    _
  $region3: #{trans_mlp.1} parent=0 // pred_check_branch
    %11 = sbr.rel (0) target = $region5
  $region4: #{trans_mlp.1} parent=0 // pred_region
    _
  $region5: #{trans_mlp.1} parent=0 // pred_fallthru
    _
  // Predicated region
  $region6: #{trans_mlp.1} parent=0 // pred_check
    _
  $region7: #{trans_mlp.1} parent=0 // pred_check_branch
    %13 = sbr.rel (0) target = $region9
  $region8: #{trans_mlp.1} parent=0 // pred_region
    _
  $region9: #{trans_mlp.1} parent=0 // pred_fallthru
    _
  // Predicated region
  $region10: #{trans_mlp.1} parent=0 // pred_check
    _
  $region11: #{trans_mlp.1} parent=0 // pred_check_branch
    %15 = sbr.rel (0) target = $region13
  $region12: #{trans_mlp.1} parent=0 // pred_region
    _
  $region13: #{trans_mlp.1} parent=0 // pred_fallthru
    _
  // Predicated region
  $region14: #{trans_mlp.1} parent=0 // pred_check
    _
  $region15: #{trans_mlp.1} parent=0 // pred_check_branch
    %17 = sbr.rel (0) target = $region17
  $region16: #{trans_mlp.1} parent=0 // pred_region
    _
  $region17: #{trans_mlp.1} parent=0 // pred_fallthru
    _
  // Predicated region
  $region18: #{trans_mlp.1} parent=0 // pred_check
    _
  $region19: #{trans_mlp.1} parent=0 // pred_check_branch
    %19 = sbr.rel (0) target = $region21
  $region20: #{trans_mlp.1} parent=0 // pred_region
    _
  $region21: #{trans_mlp.1} parent=0 // pred_fallthru
    _
  %v21 = vld [vmem:[%s0] sm:$0xf]
  %v22 = vld [vmem:[%s0 + $0x4] sm:$0xf]
  %v23 = vld [vmem:[%s1] sm:$0xf]
  %v24 = vld [vmem:[%s1 + $0x4] sm:$0xf]
  %v25 = vld [vmem:[%s1 + $0x8] sm:$0xf]
  %v26 = vld [vmem:[%s1 + $0xc] sm:$0xf]
  %v27 = vld [vmem:[%s1 + $0x10] sm:$0xf]
  %v28 = vld [vmem:[%s1 + $0x14] sm:$0xf]
  %v29 = vld [vmem:[%s1 + $0x18] sm:$0xf]
  %v30 = vld [vmem:[%s1 + $0x1c] sm:$0xf]
  %v31 = vld [vmem:[%s1 + $0x20] sm:$0xf]
  %v32 = vld [vmem:[%s1 + $0x24] sm:$0xf]
  %v33 = vld [vmem:[%s1 + $0x28] sm:$0xf]
  %v34 = vld [vmem:[%s1 + $0x2c] sm:$0xf]
  %v35 = vld [vmem:[%s1 + $0x30] sm:$0xf]
  %v36 = vld [vmem:[%s1 + $0x34] sm:$0xf]
  %v37 = vld [vmem:[%s1 + $0x38] sm:$0xf]
  %v38 = vld [vmem:[%s1 + $0x3c] sm:$0xf]
  %v39 = vld [vmem:[%s2] sm:$0x1]
  %v41 = vlaneseq
  %v42 = vshrl.u32 %v41, 7
  %v43 = vsub.s32 0, %v42
  %v44 = vrot.slane %v39, %v43
  %v48 = vunpack.c.l.b16 %v21
  %v49 = vunpack.c.l.b16 %v22
  %v50 = vpack.c.b16 %v49, %v48
  %v68 = vunpack.c.l.b16 %v23
  %v69 = vunpack.c.l.b16 %v24
  %v70 = vunpack.c.l.b16 %v25
  %v71 = vunpack.c.l.b16 %v26
  %v72 = vunpack.c.l.b16 %v27
  %v73 = vunpack.c.l.b16 %v28
  %v74 = vunpack.c.l.b16 %v29
  %v75 = vunpack.c.l.b16 %v30
  %v76 = vunpack.c.l.b16 %v31
  %v77 = vunpack.c.l.b16 %v32
  %v78 = vunpack.c.l.b16 %v33
  %v79 = vunpack.c.l.b16 %v34
  %v80 = vunpack.c.l.b16 %v35
  %v81 = vunpack.c.l.b16 %v36
  %v82 = vunpack.c.l.b16 %v37
  %v83 = vunpack.c.l.b16 %v38
  %v84 = vpack.c.b16 %v69, %v68
  %v85 = vpack.c.b16 %v71, %v70
  %v86 = vpack.c.b16 %v73, %v72
  %v87 = vpack.c.b16 %v75, %v74
  %v88 = vpack.c.b16 %v77, %v76
  %v89 = vpack.c.b16 %v79, %v78
  %v90 = vpack.c.b16 %v81, %v80
  %v91 = vpack.c.b16 %v83, %v82
  %100 = vmatprep.subr.bf16.mxu0 0
  %101 = vmatpush1.bf16.msra.mxu0 %v84
  %102 = vmatprep.subr.bf16.mxu0 0
  %103 = vmatpush1.bf16.msra.mxu0 %v85
  %104 = vmatprep.subr.bf16.mxu0 0
  %105 = vmatpush1.bf16.msra.mxu0 %v86
  %106 = vmatprep.subr.bf16.mxu0 0
  %107 = vmatpush1.bf16.msra.mxu0 %v87
  %108 = vmatprep.subr.bf16.mxu0 0
  %109 = vmatpush1.bf16.msra.mxu0 %v88
  %110 = vmatprep.subr.bf16.mxu0 0
  %111 = vmatpush1.bf16.msra.mxu0 %v89
  %112 = vmatprep.subr.bf16.mxu0 0
  %113 = vmatpush1.bf16.msra.mxu0 %v90
  %114 = vmatprep.subr.bf16.mxu0 0
  %115 = vmatpush1.bf16.msra.mxu0 %v91
  %116 = vmatprep.subr.bf16.mxu0 0
  %117 = vmatpush1.bf16.msra.mxu0 0
  %118 = vmatprep.subr.bf16.mxu0 0
  %119 = vmatpush1.bf16.msra.mxu0 0
  %120 = vmatprep.subr.bf16.mxu0 0
  %121 = vmatpush1.bf16.msra.mxu0 0
  %122 = vmatprep.subr.bf16.mxu0 0
  %123 = vmatpush1.bf16.msra.mxu0 0
  %124 = vmatprep.subr.bf16.mxu0 0
  %125 = vmatpush1.bf16.msra.mxu0 0
  %126 = vmatprep.subr.bf16.mxu0 0
  %127 = vmatpush1.bf16.msra.mxu0 0
  %128 = vmatprep.subr.bf16.mxu0 0
  %129 = vmatpush1.bf16.msra.mxu0 0
  %130 = vmatprep.subr.bf16.mxu0 0
  %131 = vmatpush1.bf16.msra.mxu0 0
  %132 = vmatprep.mubr.bf16.mxu0 0
  %133 = vmatmul.mubr.bf16.gmra.mrb[0].mxu0 %v50
  %v134 = vpop.f32.mrb[0].mxu0
  %v135 = vadd.f32 %v44, %v134
  %v136 = vpop.f32.mrb[0].mxu0
  %v137 = vpop.f32.mrb[0].mxu0
  %v138 = vadd.f32 %v44, %v137
  %v139 = vpop.f32.mrb[0].mxu0
  %140 = vdwg.mxu0
  %v141 = vmul.f32 %v135, 0.5
  %v142 = vmul.f32 %v138, 0.5
  %v143 = vmul.f32 %v135, 0.70710677
  %v144 = vmul.f32 %v138, 0.70710677
  %v145 = verf.f32.pop %v143
  %v146 = verf.f32.pop %v144
  %v147 = vadd.f32 %v145, 1.0
  %v148 = vadd.f32 %v146, 1.0
  %v149 = vmul.f32 %v141, %v147
  %v150 = vmul.f32 %v142, %v148
  %v151 = vpack.c.bf16 %v150, %v149
  %v152 = vld [vmem:[%s3] sm:$0xf]
  %v153 = vld [vmem:[%s3 + $0x4] sm:$0xf]
  %v154 = vld [vmem:[%s3 + $0x8] sm:$0xf]
  %v155 = vld [vmem:[%s3 + $0xc] sm:$0xf]
  %v156 = vld [vmem:[%s3 + $0x10] sm:$0xf]
  %v157 = vld [vmem:[%s3 + $0x14] sm:$0xf]
  %v158 = vld [vmem:[%s3 + $0x18] sm:$0xf]
  %v159 = vld [vmem:[%s3 + $0x1c] sm:$0xf]
  %v160 = vld [vmem:[%s3 + $0x20] sm:$0xf]
  %v161 = vld [vmem:[%s3 + $0x24] sm:$0xf]
  %v162 = vld [vmem:[%s3 + $0x28] sm:$0xf]
  %v163 = vld [vmem:[%s3 + $0x2c] sm:$0xf]
  %v164 = vld [vmem:[%s3 + $0x30] sm:$0xf]
  %v165 = vld [vmem:[%s3 + $0x34] sm:$0xf]
  %v166 = vld [vmem:[%s3 + $0x38] sm:$0xf]
  %v167 = vld [vmem:[%s3 + $0x3c] sm:$0xf]
  %v184 = vunpack.c.l.b16 %v152
  %v185 = vunpack.c.l.b16 %v153
  %v186 = vunpack.c.l.b16 %v154
  %v187 = vunpack.c.l.b16 %v155
  %v188 = vunpack.c.l.b16 %v156
  %v189 = vunpack.c.l.b16 %v157
  %v190 = vunpack.c.l.b16 %v158
  %v191 = vunpack.c.l.b16 %v159
  %v192 = vunpack.c.l.b16 %v160
  %v193 = vunpack.c.l.b16 %v161
  %v194 = vunpack.c.l.b16 %v162
  %v195 = vunpack.c.l.b16 %v163
  %v196 = vunpack.c.l.b16 %v164
  %v197 = vunpack.c.l.b16 %v165
  %v198 = vunpack.c.l.b16 %v166
  %v199 = vunpack.c.l.b16 %v167
  %v200 = vpack.c.b16 %v185, %v184
  %v201 = vpack.c.b16 %v187, %v186
  %v202 = vpack.c.b16 %v189, %v188
  %v203 = vpack.c.b16 %v191, %v190
  %v204 = vpack.c.b16 %v193, %v192
  %v205 = vpack.c.b16 %v195, %v194
  %v206 = vpack.c.b16 %v197, %v196
  %v207 = vpack.c.b16 %v199, %v198
  %216 = vmatprep.subr.bf16.mxu0 0
  %217 = vmatpush1.bf16.msra.mxu0 %v200
  %218 = vmatprep.subr.bf16.mxu0 0
  %219 = vmatpush1.bf16.msra.mxu0 %v201
  %220 = vmatprep.subr.bf16.mxu0 0
  %221 = vmatpush1.bf16.msra.mxu0 %v202
  %222 = vmatprep.subr.bf16.mxu0 0
  %223 = vmatpush1.bf16.msra.mxu0 %v203
  %224 = vmatprep.subr.bf16.mxu0 0
  %225 = vmatpush1.bf16.msra.mxu0 %v204
  %226 = vmatprep.subr.bf16.mxu0 0
  %227 = vmatpush1.bf16.msra.mxu0 %v205
  %228 = vmatprep.subr.bf16.mxu0 0
  %229 = vmatpush1.bf16.msra.mxu0 %v206
  %230 = vmatprep.subr.bf16.mxu0 0
  %231 = vmatpush1.bf16.msra.mxu0 %v207
  %232 = vmatprep.subr.bf16.mxu0 0
  %233 = vmatpush1.bf16.msra.mxu0 0
  %234 = vmatprep.subr.bf16.mxu0 0
  %235 = vmatpush1.bf16.msra.mxu0 0
  %236 = vmatprep.subr.bf16.mxu0 0
  %237 = vmatpush1.bf16.msra.mxu0 0
  %238 = vmatprep.subr.bf16.mxu0 0
  %239 = vmatpush1.bf16.msra.mxu0 0
  %240 = vmatprep.subr.bf16.mxu0 0
  %241 = vmatpush1.bf16.msra.mxu0 0
  %242 = vmatprep.subr.bf16.mxu0 0
  %243 = vmatpush1.bf16.msra.mxu0 0
  %244 = vmatprep.subr.bf16.mxu0 0
  %245 = vmatpush1.bf16.msra.mxu0 0
  %246 = vmatprep.subr.bf16.mxu0 0
  %247 = vmatpush1.bf16.msra.mxu0 0
  %248 = vmatprep.mubr.bf16.mxu0 0
  %249 = vmatmul.mubr.bf16.gmra.mrb[0].mxu0 %v151
  %v250 = vpop.f32.mrb[0].mxu0
  %v251 = vadd.f32 0.0, %v250
  %v252 = vpop.f32.mrb[0].mxu0
  %v253 = vpop.f32.mrb[0].mxu0
  %v254 = vadd.f32 0.0, %v253
  %v255 = vpop.f32.mrb[0].mxu0
  %256 = vdwg.mxu0
  %p257 = scmp.eq.s32.totalorder 0, 0
  // Predicated region
  $region22: #{trans_mlp.1} parent=0 // pred_check
    %p258 = pneg %p257
  $region23: #{trans_mlp.1} parent=0 // pred_check_branch
    %260 = sbr.rel (%p258) target = $region25
  $region24: #{trans_mlp.1} parent=0 // pred_region
    %v261 = vld [vmem:[%s4] sm:$0x1]
    %v263 = vlaneseq
    %v264 = vshrl.u32 %v263, 7
    %v265 = vsub.s32 0, %v264
    %v266 = vrot.slane %v261, %v265
    %v268 = vadd.f32 %v251, %v266
    %v269 = vadd.f32 %v254, %v266
    %270 = vst [vmem:[%s5] sm:$0xff] %v268
    %271 = vst [vmem:[%s5 + $0x8] sm:$0xff] %v269
  $region25: #{trans_mlp.1} parent=0 // pred_fallthru
    _
  %p272 = scmp.gt.s32.totalorder 0, 0
  // Predicated region
  $region26: #{trans_mlp.1} parent=0 // pred_check
    %p273 = pneg %p272
  $region27: #{trans_mlp.1} parent=0 // pred_check_branch
    %275 = sbr.rel (%p273) target = $region29
  $region28: #{trans_mlp.1} parent=0 // pred_region
    %v276 = vld [vmem:[%s5] sm:$0xff]
    %v277 = vld [vmem:[%s5 + $0x8] sm:$0xff]
    %v278 = vadd.f32 %v276, %v251
    %v279 = vadd.f32 %v277, %v254
    %280 = vst [vmem:[%s5] sm:$0xff] %v278
    %281 = vst [vmem:[%s5 + $0x8] sm:$0xff] %v279
  $region29: #{trans_mlp.1} parent=0 // pred_fallthru
    _
  // Predicated region
  $region30: #{trans_mlp.1} parent=0 // pred_check
    _
  $region31: #{trans_mlp.1} parent=0 // pred_check_branch
    %283 = sbr.rel (0) target = $region33
  $region32: #{trans_mlp.1} parent=0 // pred_region
    _
  $region33: #{trans_mlp.1} parent=0 // pred_fallthru
    _
  // Predicated region
  $region34: #{trans_mlp.1} parent=0 // pred_check
    _
  $region35: #{trans_mlp.1} parent=0 // pred_check_branch
    %285 = sbr.rel (0) target = $region37
  $region36: #{trans_mlp.1} parent=0 // pred_region
    _
  $region37: #{trans_mlp.1} parent=0 // pred_fallthru
    _

</llo_original>
